<compile_context>
chip_gen: v5e
topology: v5e:2x2
jax: 0.10.0
libtpu: 0.0.40
codegen_flags: <defaults>
</compile_context>

<pallas_src>
import functools

import jax
import jax.numpy as jnp
from jax.experimental import pallas as pl
from jax.experimental.pallas import tpu as pltpu


# ----------------------------- Pallas kernel -------------------------------

def _embed_kernel(patches_ref, wconv_ref, bconv_ref, wfc_ref, bfc_ref, out_ref,
                  *, bt, hw):
    # patches_ref: (Bt*HW, CK)  bf16  im2col patches for Bt images
    # wconv_ref  : (CK, COUT)   bf16  conv weight (flattened, transposed)
    # bconv_ref  : (1, COUT)    f32   conv bias
    # wfc_ref    : (COUT, D)    f32   fc weight (transposed vs. PyTorch)
    # bfc_ref    : (1, D)       f32   fc bias
    # out_ref    : (1, Bt, D)   f32   embeddings for this tile
    # Conv as one large im2col matmul (bf16 x bf16 -> f32) + bias + ReLU.
    conv = jnp.dot(patches_ref[...], wconv_ref[...],
                   preferred_element_type=jnp.float32)        # (Bt*HW, COUT)
    conv = jnp.maximum(conv + bconv_ref[...], 0.0)

    # Global average pool over spatial positions -> (Bt, COUT).
    cout = conv.shape[-1]
    pooled = jnp.sum(conv.reshape(bt, hw, cout), axis=1) * (1.0 / hw)

    # Fully-connected projection (f32) -> (Bt, D).
    emb = jnp.dot(pooled, wfc_ref[...], preferred_element_type=jnp.float32)
    emb = emb + bfc_ref[...]

    # L2 normalize each embedding row.
    sq = jnp.sum(emb * emb, axis=-1, keepdims=True)
    out_ref[0] = emb * jax.lax.rsqrt(sq + 1e-12)


def _embed_pallas(patches2d, wconv, bconv, wfc, bfc, *, bt, hw):
    # patches2d: (N_pad*HW, CK) bf16, N_pad a multiple of bt.
    n_pad_hw, ck = patches2d.shape
    n_pad = n_pad_hw // hw
    grid = n_pad // bt
    cout = wconv.shape[1]
    d = wfc.shape[1]

    kernel = functools.partial(_embed_kernel, bt=bt, hw=hw)
    out = pl.pallas_call(
        kernel,
        out_shape=jax.ShapeDtypeStruct((grid, bt, d), jnp.float32),
        grid_spec=pltpu.PrefetchScalarGridSpec(
            num_scalar_prefetch=0,
            grid=(grid,),
            in_specs=[
                pl.BlockSpec((bt * hw, ck), lambda b: (b, 0)),
                pl.BlockSpec((ck, cout), lambda b: (0, 0)),
                pl.BlockSpec((1, cout), lambda b: (0, 0)),
                pl.BlockSpec((cout, d), lambda b: (0, 0)),
                pl.BlockSpec((1, d), lambda b: (0, 0)),
            ],
            out_specs=pl.BlockSpec((1, bt, d), lambda b: (b, 0, 0)),
        ),
        compiler_params=pltpu.CompilerParams(
            dimension_semantics=("parallel",)),
    )(patches2d, wconv, bconv, wfc, bfc)
    return out.reshape(n_pad, d)


# ------------------------------- JAX glue ----------------------------------

def _im2col_3x3_pad1(x):
    """x: (B, C, H, W) NCHW -> (B, H*W, C*9) patches (stride 1, pad 1)."""
    B, C, H, W = x.shape
    xp = jnp.pad(x, ((0, 0), (0, 0), (1, 1), (1, 1)))
    slices = []
    for kh in range(3):
        for kw in range(3):
            slices.append(xp[:, :, kh:kh + H, kw:kw + W])      # (B, C, H, W)
    p = jnp.stack(slices, axis=2)                              # (B, C, 9, H, W)
    p = p.transpose(0, 3, 4, 1, 2)                             # (B, H, W, C, 9)
    return p.reshape(B, H * W, C * 9)


def init_params(key, c_in=4, c_out=8, embed_dim=32):
    """Deterministic synthetic weights (PyTorch-style shapes, then flattened)."""
    k1, k2, k3, k4 = jax.random.split(key, 4)
    wconv_pt = jax.random.normal(k1, (c_out, c_in, 3, 3), jnp.float32) * 0.1
    bconv = jax.random.normal(k2, (c_out,), jnp.float32) * 0.1
    wfc_pt = jax.random.normal(k3, (embed_dim, c_out), jnp.float32) * 0.1
    bfc = jax.random.normal(k4, (embed_dim,), jnp.float32) * 0.1
    # Flatten / transpose into the layouts the kernel expects; conv weight is
    # bf16 (MXU input dtype), small fc/bias tensors stay f32.
    wconv = wconv_pt.reshape(c_out, c_in * 9).T.astype(jnp.bfloat16)  # (C*9, C_out)
    wfc = wfc_pt.T                                                    # (C_out, D)
    return dict(wconv=wconv, bconv=bconv.reshape(1, c_out),
                wfc=wfc, bfc=bfc.reshape(1, embed_dim))


def _pick_bt(n, bt_max=16):
    # >=2 grid steps whenever n >= 2 (so the batch axis can shard across both
    # v7x TensorCores); bt_max=16 keeps VMEM (double-buffered patches + f32
    # conv intermediate) well under the default scoped limit on v5e/v6e/v7x.
    return max(1, min(bt_max, pl.cdiv(n, 2)))


@jax.jit
def encode(params, images_nchw):
    """TripletNet.encode: one embedding per image (N, C, H, W) -> (N, D)."""
    n, _, h, w = images_nchw.shape
    hw = h * w
    patches = _im2col_3x3_pad1(images_nchw).astype(jnp.bfloat16)   # (N, HW, CK)
    bt = _pick_bt(n)
    n_pad = pl.cdiv(n, bt) * bt
    if n_pad != n:
        patches = jnp.pad(patches, ((0, n_pad - n), (0, 0), (0, 0)))
    patches2d = patches.reshape(n_pad * hw, patches.shape[-1])
    out = _embed_pallas(patches2d, params["wconv"], params["bconv"],
                        params["wfc"], params["bfc"], bt=bt, hw=hw)
    return out[:n]


@jax.jit
def triplet_net_forward(params, anchor, pos, neg):
    """TripletNet.forward: shared embedding model applied to all three inputs.

    Fused into ONE pallas_call by concatenating along batch (3x fewer kernel
    launches and weight DMAs), then split back into three embeddings.
    """
    b = anchor.shape[0]
    stacked = jnp.concatenate([anchor, pos, neg], axis=0)          # (3B, C, H, W)
    emb = encode(params, stacked)                                  # (3B, D)
    return emb[:b], emb[b:2 * b], emb[2 * b:]


# Pure-JAX reference of the same embedding model (mirrors kernel numerics:
# bf16 conv inputs with f32 accumulation), for a correctness check.
def _embed_ref(params, x):
    patches = _im2col_3x3_pad1(x).astype(jnp.bfloat16)             # (B, HW, CK)
    conv = jax.lax.dot_general(
        patches, params["wconv"],
        dimension_numbers=(((2,), (0,)), ((), ())),
        preferred_element_type=jnp.float32)
    conv = jnp.maximum(conv + params["bconv"], 0.0)
    pooled = jnp.mean(conv, axis=1)                                # (B, C_out)
    emb = jnp.dot(pooled, params["wfc"],
                  precision=jax.lax.Precision.HIGHEST) + params["bfc"]
    return emb / jnp.sqrt(jnp.sum(emb * emb, axis=-1, keepdims=True) + 1e-12)


if __name__ == "__main__":
    B, C, H, W = 2, 4, 16, 16
    D = 32
    key = jax.random.PRNGKey(0)
    kp, ka, kpz, kn = jax.random.split(key, 4)

    params = init_params(kp, c_in=C, c_out=8, embed_dim=D)
    anchor = jax.random.normal(ka, (B, C, H, W), jnp.float32)
    pos = jax.random.normal(kpz, (B, C, H, W), jnp.float32)
    neg = jax.random.normal(kn, (B, C, H, W), jnp.float32)

    out_a, out_p, out_n = triplet_net_forward(params, anchor, pos, neg)
    jax.block_until_ready((out_a, out_p, out_n))

    # Sanity-check against the pure-JAX reference (tolerance covers bf16 conv
    # inputs + minor reduction-order differences between Mosaic and XLA).
    for got, x in ((out_a, anchor), (out_p, pos), (out_n, neg)):
        ref = _embed_ref(params, x)
        assert got.shape == (B, D)
        assert jnp.allclose(got, ref, atol=2e-2, rtol=2e-2)
        norms = jnp.sqrt(jnp.sum(got * got, axis=-1))
        assert jnp.allclose(norms, jnp.ones_like(norms), atol=1e-3)

    # encode() path (TripletNet.encode) also works standalone.
    enc = jax.block_until_ready(encode(params, anchor))
    assert enc.shape == (B, D)
    assert jnp.allclose(enc, out_a, atol=1e-5, rtol=1e-5)

    print("KERNEL_OK")
</pallas_src>

<mosaic_0001>
module attributes {stable_mosaic.version = 11 : i64} {
  func.func @_embed_kernel(%arg0: i32, %arg1: memref<768x36xbf16, #tpu.memory_space<vmem>>, %arg2: memref<36x8xbf16, #tpu.memory_space<vmem>>, %arg3: memref<1x8xf32, #tpu.memory_space<vmem>>, %arg4: memref<8x32xf32, #tpu.memory_space<vmem>>, %arg5: memref<1x32xf32, #tpu.memory_space<vmem>>, %arg6: memref<1x3x32xf32, #tpu.memory_space<vmem>>) attributes {dimension_semantics = [#tpu.dimension_semantics<parallel>], iteration_bounds = array<i64: 2>, scalar_prefetch = 0 : i64, scratch_operands = 0 : i64, tpu.core_type = #tpu.core_type<tc>, window_params = [{transform_indices = @transform_0, window_bounds = array<i64: 768, 36>}, {pipeline_mode = #tpu.pipeline_mode<synchronous>, transform_indices = @transform_1, window_bounds = array<i64: 36, 8>}, {pipeline_mode = #tpu.pipeline_mode<synchronous>, transform_indices = @transform_2, window_bounds = array<i64: 1, 8>}, {pipeline_mode = #tpu.pipeline_mode<synchronous>, transform_indices = @transform_3, window_bounds = array<i64: 8, 32>}, {pipeline_mode = #tpu.pipeline_mode<synchronous>, transform_indices = @transform_4, window_bounds = array<i64: 1, 32>}, {transform_indices = @transform_5, window_bounds = array<i64: 1, 3, 32>}]} {
    %c0 = arith.constant 0 : index
    %c0_0 = arith.constant 0 : index
    %0 = vector.load %arg1[%c0, %c0_0] : memref<768x36xbf16, #tpu.memory_space<vmem>>, vector<768x36xbf16>
    %c0_1 = arith.constant 0 : index
    %c0_2 = arith.constant 0 : index
    %1 = vector.load %arg2[%c0_1, %c0_2] : memref<36x8xbf16, #tpu.memory_space<vmem>>, vector<36x8xbf16>
    %cst = arith.constant dense<0.000000e+00> : vector<768x8xf32>
    %2 = tpu.matmul %0, %1, %cst {dimension_numbers = #tpu.dot_dimension_numbers<[1], [0], [0], [1], [0, 0, 1, 1], [], []>} : vector<768x36xbf16>, vector<36x8xbf16>, vector<768x8xf32> -> vector<768x8xf32>
    %c0_3 = arith.constant 0 : index
    %c0_4 = arith.constant 0 : index
    %3 = vector.load %arg3[%c0_3, %c0_4] : memref<1x8xf32, #tpu.memory_space<vmem>>, vector<1x8xf32>
    %4 = vector.broadcast %3 : vector<1x8xf32> to vector<768x8xf32>
    %5 = arith.addf %2, %4 : vector<768x8xf32>
    %cst_5 = arith.constant 0.000000e+00 : f32
    %6 = vector.broadcast %cst_5 : f32 to vector<768x8xf32>
    %7 = arith.maximumf %5, %6 : vector<768x8xf32>
    %8 = vector.shape_cast %7 : vector<768x8xf32> to vector<3x256x8xf32>
    %cst_6 = arith.constant dense<0.000000e+00> : vector<3x8xf32>
    %9 = vector.multi_reduction <add>, %8, %cst_6 [1] : vector<3x256x8xf32> to vector<3x8xf32>
    %cst_7 = arith.constant 3.906250e-03 : f32
    %10 = vector.broadcast %cst_7 : f32 to vector<3x8xf32>
    %11 = arith.mulf %9, %10 : vector<3x8xf32>
    %c0_8 = arith.constant 0 : index
    %c0_9 = arith.constant 0 : index
    %12 = vector.load %arg4[%c0_8, %c0_9] : memref<8x32xf32, #tpu.memory_space<vmem>>, vector<8x32xf32>
    %cst_10 = arith.constant dense<0.000000e+00> : vector<3x32xf32>
    %13 = tpu.matmul %11, %12, %cst_10 {dimension_numbers = #tpu.dot_dimension_numbers<[1], [0], [0], [1], [0, 0, 1, 1], [], []>} : vector<3x8xf32>, vector<8x32xf32>, vector<3x32xf32> -> vector<3x32xf32>
    %c0_11 = arith.constant 0 : index
    %c0_12 = arith.constant 0 : index
    %14 = vector.load %arg5[%c0_11, %c0_12] : memref<1x32xf32, #tpu.memory_space<vmem>>, vector<1x32xf32>
    %15 = vector.broadcast %14 : vector<1x32xf32> to vector<3x32xf32>
    %16 = arith.addf %13, %15 : vector<3x32xf32>
    %17 = arith.mulf %16, %16 : vector<3x32xf32>
    %cst_13 = arith.constant dense<0.000000e+00> : vector<3xf32>
    %18 = vector.multi_reduction <add>, %17, %cst_13 [1] : vector<3x32xf32> to vector<3xf32>
    %19 = vector.shape_cast %18 : vector<3xf32> to vector<3x1xf32>
    %cst_14 = arith.constant 9.99999996E-13 : f32
    %20 = vector.broadcast %cst_14 : f32 to vector<3x1xf32>
    %21 = arith.addf %19, %20 : vector<3x1xf32>
    %22 = math.rsqrt %21 : vector<3x1xf32>
    %23 = vector.broadcast %22 : vector<3x1xf32> to vector<3x32xf32>
    %24 = arith.mulf %16, %23 : vector<3x32xf32>
    %c0_15 = arith.constant 0 : index
    %c0_16 = arith.constant 0 : index
    %c0_17 = arith.constant 0 : index
    %25 = vector.load %arg6[%c0_15, %c0_16, %c0_17] : memref<1x3x32xf32, #tpu.memory_space<vmem>>, vector<1x3x32xf32>
    %26 = vector.shape_cast %25 : vector<1x3x32xf32> to vector<3x32xf32>
    %27 = vector.shape_cast %24 : vector<3x32xf32> to vector<1x3x32xf32>
    tpu.vector_store %arg6[%c0_15, %c0_16, %c0_17], %27 {strides = array<i32>} : memref<1x3x32xf32, #tpu.memory_space<vmem>>, vector<1x3x32xf32>,
    return
  }
  func.func @transform_0(%arg0: i32) -> (i32, i32) {
    %c0_i32 = arith.constant 0 : i32
    %c0_i32_0 = arith.constant 0 : i32
    return %arg0, %c0_i32 : i32, i32
  }
  func.func @transform_1(%arg0: i32) -> (i32, i32) {
    %c0_i32 = arith.constant 0 : i32
    %c0_i32_0 = arith.constant 0 : i32
    %c0_i32_1 = arith.constant 0 : i32
    return %c0_i32, %c0_i32_0 : i32, i32
  }
  func.func @transform_2(%arg0: i32) -> (i32, i32) {
    %c0_i32 = arith.constant 0 : i32
    %c0_i32_0 = arith.constant 0 : i32
    %c0_i32_1 = arith.constant 0 : i32
    return %c0_i32, %c0_i32_0 : i32, i32
  }
  func.func @transform_3(%arg0: i32) -> (i32, i32) {
    %c0_i32 = arith.constant 0 : i32
    %c0_i32_0 = arith.constant 0 : i32
    %c0_i32_1 = arith.constant 0 : i32
    return %c0_i32, %c0_i32_0 : i32, i32
  }
  func.func @transform_4(%arg0: i32) -> (i32, i32) {
    %c0_i32 = arith.constant 0 : i32
    %c0_i32_0 = arith.constant 0 : i32
    %c0_i32_1 = arith.constant 0 : i32
    return %c0_i32, %c0_i32_0 : i32, i32
  }
  func.func @transform_5(%arg0: i32) -> (i32, i32, i32) {
    %c0_i32 = arith.constant 0 : i32
    %c0_i32_0 = arith.constant 0 : i32
    %c0_i32_1 = arith.constant 0 : i32
    return %arg0, %c0_i32, %c0_i32_0 : i32, i32, i32
  }
}

</mosaic_0001>

<llo_original>
// kernel: encode.1
$region0: #{encode.1}
  #allocation0 [shape = 'u32[]', space=smem, size = 0x4, offset = 0x4, fixed_abs, tag = 'smem constant byte address 0x4 - core index']
  #allocation1 [shape = 'u32[72,128]{1,0:T(1,128)}', space=vmem, size = 0x9000, scoped, tag = 'internal scratch']
  %s0 = inlined_call_operand.vmem [shape: bf16[1536,36], index: 0, kind: input, shape index: {}]
  %s1 = inlined_call_operand.vmem [shape: bf16[36,8], index: 1, kind: input, shape index: {}]
  %s2 = inlined_call_operand.vmem [shape: f32[1,8], index: 2, kind: input, shape index: {}]
  %s3 = inlined_call_operand.vmem [shape: f32[8,32], index: 3, kind: input, shape index: {}]
  %s4 = inlined_call_operand.vmem [shape: f32[1,32], index: 4, kind: input, shape index: {}]
  %s5 = inlined_call_operand.vmem [shape: f32[2,3,32], index: 5, kind: output, shape index: {}]
  %s6 = sld [smem:[#allocation0]]
  $region53: #{encode.1} parent=0
    _
  %s8 = ssub.s32 1, %s6
  %s9 = scalar_select 0, %s8, %s6
  loop: start=0, step=1, limit=4
  $region2: #{encode.1} parent=0 // loop_pre_header
    _
  $region3: #{encode.1} parent=0 // loop_header
    %s11 = sphi 0, %s15
    %p12 = scmp.ge.s32.totalorder %s11, 4
    %s21 = sphi 0, %s23
    %s24 = sphi 0, %s21
    %s25 = sphi 0, %s24
    %s41 = sphi 0, %s25
    %s45 = sphi 0, %s45
    %s47 = sphi 0, %s45
    %s48 = sphi 0, %s47
    %s62 = sphi 0, %s48
    %s66 = sphi 0, %s66
    %s68 = sphi 0, %s66
    %s69 = sphi 0, %s68
    %s83 = sphi 0, %s69
    %s87 = sphi 0, %s87
    %s89 = sphi 0, %s87
    %s90 = sphi 0, %s89
    %s104 = sphi 0, %s90
    %s108 = sphi 0, %s108
    %s110 = sphi 0, %s108
    %s111 = sphi 0, %s110
    %s125 = sphi 0, %s111
    %s131 = sphi 0, %s133
    %s134 = sphi 0, %s131
    %s135 = sphi 0, %s134
    %s151 = sphi 0, %s135
  $region4: #{encode.1} parent=0 // loop_header_branch
    %14 = sbr.rel (%p12) target = $region8
  $region5: #{encode.1} parent=0 // loop_body
    %s16 = ssub.s32 %s11, 1
    %s17 = ssub.s32 %s11, 2
    %s18 = sadd.s32 %s11, 1
    %s19 = ssub.s32 %s11, %s18
    %p20 = scmp.eq.s32.totalorder %s19, 0
    %s22 = sadd.s32 %s21, 1
    %s23 = scalar_select %p20, %s21, %s22
    %p26 = pneg %p20
    %p27 = scmp.eq.s32.totalorder %s11, 1
    %p28 = por %p26, %p27
    %p29 = scmp.ne.s32.totalorder %s21, %s24
    %p30 = scmp.eq.s32.totalorder %s11, 0
    %p31 = por %p29, %p30
    %p32 = scmp.ne.s32.totalorder %s21, %s24
    %p33 = scmp.eq.s32.totalorder %s16, 1
    %p34 = por %p32, %p33
    %p35 = scmp.ne.s32.totalorder %s24, %s25
    %p36 = scmp.eq.s32.totalorder %s16, 0
    %p37 = por %p35, %p36
    %p38 = scmp.ne.s32.totalorder %s24, %s25
    %p39 = scmp.eq.s32.totalorder %s17, 1
    %p40 = por %p38, %p39
    %p42 = scmp.ne.s32.totalorder %s25, %s41
    %p43 = scmp.eq.s32.totalorder %s17, 0
    %p44 = por %p42, %p43
    %s46 = sadd.s32 %s45, 1
    %p49 = scmp.eq.s32.totalorder %s11, 1
    %p50 = scmp.ne.s32.totalorder %s45, %s47
    %p51 = scmp.eq.s32.totalorder %s11, 0
    %p52 = por %p50, %p51
    %p53 = scmp.ne.s32.totalorder %s45, %s47
    %p54 = scmp.eq.s32.totalorder %s16, 1
    %p55 = por %p53, %p54
    %p56 = scmp.ne.s32.totalorder %s47, %s48
    %p57 = scmp.eq.s32.totalorder %s16, 0
    %p58 = por %p56, %p57
    %p59 = scmp.ne.s32.totalorder %s47, %s48
    %p60 = scmp.eq.s32.totalorder %s17, 1
    %p61 = por %p59, %p60
    %p63 = scmp.ne.s32.totalorder %s48, %s62
    %p64 = scmp.eq.s32.totalorder %s17, 0
    %p65 = por %p63, %p64
    %s67 = sadd.s32 %s66, 1
    %p70 = scmp.eq.s32.totalorder %s11, 1
    %p71 = scmp.ne.s32.totalorder %s66, %s68
    %p72 = scmp.eq.s32.totalorder %s11, 0
    %p73 = por %p71, %p72
    %p74 = scmp.ne.s32.totalorder %s66, %s68
    %p75 = scmp.eq.s32.totalorder %s16, 1
    %p76 = por %p74, %p75
    %p77 = scmp.ne.s32.totalorder %s68, %s69
    %p78 = scmp.eq.s32.totalorder %s16, 0
    %p79 = por %p77, %p78
    %p80 = scmp.ne.s32.totalorder %s68, %s69
    %p81 = scmp.eq.s32.totalorder %s17, 1
    %p82 = por %p80, %p81
    %p84 = scmp.ne.s32.totalorder %s69, %s83
    %p85 = scmp.eq.s32.totalorder %s17, 0
    %p86 = por %p84, %p85
    %s88 = sadd.s32 %s87, 1
    %p91 = scmp.eq.s32.totalorder %s11, 1
    %p92 = scmp.ne.s32.totalorder %s87, %s89
    %p93 = scmp.eq.s32.totalorder %s11, 0
    %p94 = por %p92, %p93
    %p95 = scmp.ne.s32.totalorder %s87, %s89
    %p96 = scmp.eq.s32.totalorder %s16, 1
    %p97 = por %p95, %p96
    %p98 = scmp.ne.s32.totalorder %s89, %s90
    %p99 = scmp.eq.s32.totalorder %s16, 0
    %p100 = por %p98, %p99
    %p101 = scmp.ne.s32.totalorder %s89, %s90
    %p102 = scmp.eq.s32.totalorder %s17, 1
    %p103 = por %p101, %p102
    %p105 = scmp.ne.s32.totalorder %s90, %s104
    %p106 = scmp.eq.s32.totalorder %s17, 0
    %p107 = por %p105, %p106
    %s109 = sadd.s32 %s108, 1
    %p112 = scmp.eq.s32.totalorder %s11, 1
    %p113 = scmp.ne.s32.totalorder %s108, %s110
    %p114 = scmp.eq.s32.totalorder %s11, 0
    %p115 = por %p113, %p114
    %p116 = scmp.ne.s32.totalorder %s108, %s110
    %p117 = scmp.eq.s32.totalorder %s16, 1
    %p118 = por %p116, %p117
    %p119 = scmp.ne.s32.totalorder %s110, %s111
    %p120 = scmp.eq.s32.totalorder %s16, 0
    %p121 = por %p119, %p120
    %p122 = scmp.ne.s32.totalorder %s110, %s111
    %p123 = scmp.eq.s32.totalorder %s17, 1
    %p124 = por %p122, %p123
    %p126 = scmp.ne.s32.totalorder %s111, %s125
    %p127 = scmp.eq.s32.totalorder %s17, 0
    %p128 = por %p126, %p127
    %s129 = ssub.s32 %s11, %s18
    %p130 = scmp.eq.s32.totalorder %s129, 0
    %s132 = sadd.s32 %s131, 1
    %s133 = scalar_select %p130, %s131, %s132
    %p136 = pneg %p130
    %p137 = scmp.eq.s32.totalorder %s11, 1
    %p138 = por %p136, %p137
    %p139 = scmp.ne.s32.totalorder %s131, %s134
    %p140 = scmp.eq.s32.totalorder %s11, 0
    %p141 = por %p139, %p140
    %p142 = scmp.ne.s32.totalorder %s131, %s134
    %p143 = scmp.eq.s32.totalorder %s16, 1
    %p144 = por %p142, %p143
    %p145 = scmp.ne.s32.totalorder %s134, %s135
    %p146 = scmp.eq.s32.totalorder %s16, 0
    %p147 = por %p145, %p146
    %p148 = scmp.ne.s32.totalorder %s134, %s135
    %p149 = scmp.eq.s32.totalorder %s17, 1
    %p150 = por %p148, %p149
    %p152 = scmp.ne.s32.totalorder %s135, %s151
    %p153 = scmp.eq.s32.totalorder %s17, 0
    %p154 = por %p152, %p153
    %p155 = scmp.le.s32.totalorder 1, %s11
    %p156 = scmp.lt.s32.totalorder %s11, 3
    %p157 = pnand %p155, %p156
    %p158 = pneg %p157
    // Predicated region
    $region9: #{encode.1} parent=5 // pred_check
      _
    $region10: #{encode.1} parent=5 // pred_check_branch
      %160 = sbr.rel (%p157) target = $region12
    $region11: #{encode.1} parent=5 // pred_region
      %s161 = ssub.s32 %s11, 1
      // Predicated region
      $region13: #{encode.1} parent=11 // pred_check
        %p162 = pneg %p58
      $region14: #{encode.1} parent=11 // pred_check_branch
        %164 = sbr.rel (%p162) target = $region16
      $region15: #{encode.1} parent=11 // pred_region
        _
      $region16: #{encode.1} parent=11 // pred_fallthru
        _
      // Predicated region
      $region17: #{encode.1} parent=11 // pred_check
        %p165 = pneg %p79
      $region18: #{encode.1} parent=11 // pred_check_branch
        %167 = sbr.rel (%p165) target = $region20
      $region19: #{encode.1} parent=11 // pred_region
        _
      $region20: #{encode.1} parent=11 // pred_fallthru
        _
      // Predicated region
      $region21: #{encode.1} parent=11 // pred_check
        %p168 = pneg %p100
      $region22: #{encode.1} parent=11 // pred_check_branch
        %170 = sbr.rel (%p168) target = $region24
      $region23: #{encode.1} parent=11 // pred_region
        _
      $region24: #{encode.1} parent=11 // pred_fallthru
        _
      // Predicated region
      $region25: #{encode.1} parent=11 // pred_check
        %p171 = pneg %p121
      $region26: #{encode.1} parent=11 // pred_check_branch
        %173 = sbr.rel (%p171) target = $region28
      $region27: #{encode.1} parent=11 // pred_region
        _
      $region28: #{encode.1} parent=11 // pred_fallthru
        _
    $region12: #{encode.1} parent=5 // pred_fallthru
      _
    %p174 = scmp.lt.s32.totalorder %s11, 2
    // Predicated region
    $region29: #{encode.1} parent=5 // pred_check
      %p175 = pneg %p174
    $region30: #{encode.1} parent=5 // pred_check_branch
      %177 = sbr.rel (%p175) target = $region32
    $region31: #{encode.1} parent=5 // pred_region
      // Predicated region
      $region33: #{encode.1} parent=31 // pred_check
        %p178 = pneg %p31
      $region34: #{encode.1} parent=31 // pred_check_branch
        %180 = sbr.rel (%p178) target = $region36
      $region35: #{encode.1} parent=31 // pred_region
        %s181 = smul.u32 96, %s11
        %p182 = scmp.lt.s32.totalorder %s181, 191
        %s183 = scalar_select %p182, %s181, 191
        %s184 = smul.addr %s183, 4
        %s185 = scalar_lea.vmem %s0, %s184
        %s186 = smul.u32 96, %s11
      $region36: #{encode.1} parent=31 // pred_fallthru
        _
    $region32: #{encode.1} parent=5 // pred_fallthru
      _
    %p187 = scmp.le.s32.totalorder 1, %s11
    %p188 = scmp.lt.s32.totalorder %s11, 3
    %p189 = pnand %p187, %p188
    %p190 = pneg %p189
    // Predicated region
    $region37: #{encode.1} parent=5 // pred_check
      _
    $region38: #{encode.1} parent=5 // pred_check_branch
      %192 = sbr.rel (%p189) target = $region40
    $region39: #{encode.1} parent=5 // pred_region
      %s193 = ssub.s32 %s11, 1
      %s194 = smul.u32 96, %s16
      %p195 = scmp.lt.s32.totalorder %s194, 191
      %s196 = scalar_select %p195, %s194, 191
      %s197 = smul.addr %s196, 4
      %s198 = scalar_lea.vmem %s0, %s197
      %p199 = pneg %p37
      %p200 = pneg %p34
      %p201 = pneg %p58
      %p202 = pneg %p55
      %p203 = pneg %p79
      %p204 = pneg %p76
      %p205 = pneg %p100
      %p206 = pneg %p97
      %p207 = pneg %p121
      %p208 = pneg %p118
      %p209 = pneg %p147
      %p210 = pneg %p144
      %p211 = scmp.lt.s32.totalorder %s16, 1
      %s212 = scalar_select %p211, %s16, 1
      %s213 = smul.addr %s212, 4
      %s214 = scalar_lea.vmem %s5, %s213
      %s215 = smul.u32 96, %s16
      %p216 = scmp.lt.s32.totalorder %s215, 191
      %s217 = scalar_select %p216, %s215, 191
      %s218 = smul.addr %s217, 4
      %s219 = scalar_lea.vmem %s0, %s218
      %s220 = smul.u32 96, %s16
      %p221 = scmp.lt.s32.totalorder %s16, 1
      %s222 = scalar_select %p221, %s16, 1
      %s223 = smul.addr %s222, 4
      %s224 = scalar_lea.vmem %s5, %s223
      %v226 = vld [vmem:[%s219] sm:$0xf]
      %v227 = vld [vmem:[%s219 + $0x4] sm:$0xf]
      %v228 = vld [vmem:[%s219 + $0x8] sm:$0xf]
      %v229 = vld [vmem:[%s219 + $0xc] sm:$0xf]
      %v230 = vld [vmem:[%s219 + $0x10] sm:$0xf]
      %v231 = vld [vmem:[%s219 + $0x14] sm:$0xf]
      %v232 = vld [vmem:[%s219 + $0x18] sm:$0xf]
      %v233 = vld [vmem:[%s219 + $0x1c] sm:$0xf]
      %v234 = vld [vmem:[%s219 + $0x20] sm:$0xf]
      %v235 = vld [vmem:[%s219 + $0x24] sm:$0xf]
      %v236 = vld [vmem:[%s219 + $0x28] sm:$0xf]
      %v237 = vld [vmem:[%s219 + $0x2c] sm:$0xf]
      %v238 = vld [vmem:[%s219 + $0x30] sm:$0xf]
      %v239 = vld [vmem:[%s219 + $0x34] sm:$0xf]
      %v240 = vld [vmem:[%s219 + $0x38] sm:$0xf]
      %v241 = vld [vmem:[%s219 + $0x3c] sm:$0xf]
      %v242 = vld [vmem:[%s219 + $0x40] sm:$0xf]
      %v243 = vld [vmem:[%s219 + $0x44] sm:$0xf]
      %v244 = vld [vmem:[%s219 + $0x48] sm:$0xf]
      %v245 = vld [vmem:[%s219 + $0x4c] sm:$0xf]
      %v246 = vld [vmem:[%s219 + $0x50] sm:$0xf]
      %v247 = vld [vmem:[%s219 + $0x54] sm:$0xf]
      %v248 = vld [vmem:[%s219 + $0x58] sm:$0xf]
      %v249 = vld [vmem:[%s219 + $0x5c] sm:$0xf]
      %v250 = vld [vmem:[%s219 + $0x60] sm:$0xf]
      %v251 = vld [vmem:[%s219 + $0x64] sm:$0xf]
      %v252 = vld [vmem:[%s219 + $0x68] sm:$0xf]
      %v253 = vld [vmem:[%s219 + $0x6c] sm:$0xf]
      %v254 = vld [vmem:[%s219 + $0x70] sm:$0xf]
      %v255 = vld [vmem:[%s219 + $0x74] sm:$0xf]
      %v256 = vld [vmem:[%s219 + $0x78] sm:$0xf]
      %v257 = vld [vmem:[%s219 + $0x7c] sm:$0xf]
      %v258 = vld [vmem:[%s219 + $0x80] sm:$0xf]
      %v259 = vld [vmem:[%s219 + $0x84] sm:$0xf]
      %v260 = vld [vmem:[%s219 + $0x88] sm:$0xf]
      %v261 = vld [vmem:[%s219 + $0x8c] sm:$0xf]
      %v262 = vld [vmem:[%s219 + $0x90] sm:$0xf]
      %v263 = vld [vmem:[%s219 + $0x94] sm:$0xf]
      %v264 = vld [vmem:[%s219 + $0x98] sm:$0xf]
      %v265 = vld [vmem:[%s219 + $0x9c] sm:$0xf]
      %v266 = vld [vmem:[%s219 + $0xa0] sm:$0xf]
      %v267 = vld [vmem:[%s219 + $0xa4] sm:$0xf]
      %v268 = vld [vmem:[%s219 + $0xa8] sm:$0xf]
      %v269 = vld [vmem:[%s219 + $0xac] sm:$0xf]
      %v270 = vld [vmem:[%s219 + $0xb0] sm:$0xf]
      %v271 = vld [vmem:[%s219 + $0xb4] sm:$0xf]
      %v272 = vld [vmem:[%s219 + $0xb8] sm:$0xf]
      %v273 = vld [vmem:[%s219 + $0xbc] sm:$0xf]
      %v274 = vld [vmem:[%s219 + $0xc0] sm:$0xf]
      %v275 = vld [vmem:[%s219 + $0xc4] sm:$0xf]
      %v276 = vld [vmem:[%s219 + $0xc8] sm:$0xf]
      %v277 = vld [vmem:[%s219 + $0xcc] sm:$0xf]
      %v278 = vld [vmem:[%s219 + $0xd0] sm:$0xf]
      %v279 = vld [vmem:[%s219 + $0xd4] sm:$0xf]
      %v280 = vld [vmem:[%s219 + $0xd8] sm:$0xf]
      %v281 = vld [vmem:[%s219 + $0xdc] sm:$0xf]
      %v282 = vld [vmem:[%s219 + $0xe0] sm:$0xf]
      %v283 = vld [vmem:[%s219 + $0xe4] sm:$0xf]
      %v284 = vld [vmem:[%s219 + $0xe8] sm:$0xf]
      %v285 = vld [vmem:[%s219 + $0xec] sm:$0xf]
      %v286 = vld [vmem:[%s219 + $0xf0] sm:$0xf]
      %v287 = vld [vmem:[%s219 + $0xf4] sm:$0xf]
      %v288 = vld [vmem:[%s219 + $0xf8] sm:$0xf]
      %v289 = vld [vmem:[%s219 + $0xfc] sm:$0xf]
      %v290 = vld [vmem:[%s219 + $0x100] sm:$0xf]
      %v291 = vld [vmem:[%s219 + $0x104] sm:$0xf]
      %v292 = vld [vmem:[%s219 + $0x108] sm:$0xf]
      %v293 = vld [vmem:[%s219 + $0x10c] sm:$0xf]
      %v294 = vld [vmem:[%s219 + $0x110] sm:$0xf]
      %v295 = vld [vmem:[%s219 + $0x114] sm:$0xf]
      %v296 = vld [vmem:[%s219 + $0x118] sm:$0xf]
      %v297 = vld [vmem:[%s219 + $0x11c] sm:$0xf]
      %v298 = vld [vmem:[%s219 + $0x120] sm:$0xf]
      %v299 = vld [vmem:[%s219 + $0x124] sm:$0xf]
      %v300 = vld [vmem:[%s219 + $0x128] sm:$0xf]
      %v301 = vld [vmem:[%s219 + $0x12c] sm:$0xf]
      %v302 = vld [vmem:[%s219 + $0x130] sm:$0xf]
      %v303 = vld [vmem:[%s219 + $0x134] sm:$0xf]
      %v304 = vld [vmem:[%s219 + $0x138] sm:$0xf]
      %v305 = vld [vmem:[%s219 + $0x13c] sm:$0xf]
      %v306 = vld [vmem:[%s219 + $0x140] sm:$0xf]
      %v307 = vld [vmem:[%s219 + $0x144] sm:$0xf]
      %v308 = vld [vmem:[%s219 + $0x148] sm:$0xf]
      %v309 = vld [vmem:[%s219 + $0x14c] sm:$0xf]
      %v310 = vld [vmem:[%s219 + $0x150] sm:$0xf]
      %v311 = vld [vmem:[%s219 + $0x154] sm:$0xf]
      %v312 = vld [vmem:[%s219 + $0x158] sm:$0xf]
      %v313 = vld [vmem:[%s219 + $0x15c] sm:$0xf]
      %v314 = vld [vmem:[%s219 + $0x160] sm:$0xf]
      %v315 = vld [vmem:[%s219 + $0x164] sm:$0xf]
      %v316 = vld [vmem:[%s219 + $0x168] sm:$0xf]
      %v317 = vld [vmem:[%s219 + $0x16c] sm:$0xf]
      %v318 = vld [vmem:[%s219 + $0x170] sm:$0xf]
      %v319 = vld [vmem:[%s219 + $0x174] sm:$0xf]
      %v320 = vld [vmem:[%s219 + $0x178] sm:$0xf]
      %v321 = vld [vmem:[%s219 + $0x17c] sm:$0xf]
      %v322 = vld [vmem:[%s1] sm:$0xf]
      %v323 = vld [vmem:[%s1 + $0x4] sm:$0xf]
      %v324 = vld [vmem:[%s1 + $0x8] sm:$0xf]
      %v325 = vld [vmem:[%s1 + $0xc] sm:$0xf]
      %v326 = vld [vmem:[%s1 + $0x10] sm:$0x3]
      %v327 = vld [vmem:[%s2] sm:$0x1]
      %v329 = vperm.slane %v327, 0
      %v427 = vunpack.c.l.b16 %v226
      %v428 = vunpack.c.l.b16 %v227
      %v429 = vunpack.c.l.b16 %v228
      %v430 = vunpack.c.l.b16 %v229
      %v431 = vunpack.c.l.b16 %v230
      %v432 = vunpack.c.l.b16 %v231
      %v433 = vunpack.c.l.b16 %v232
      %v434 = vunpack.c.l.b16 %v233
      %v435 = vunpack.c.l.b16 %v234
      %v436 = vunpack.c.l.b16 %v235
      %v437 = vunpack.c.l.b16 %v236
      %v438 = vunpack.c.l.b16 %v237
      %v439 = vunpack.c.l.b16 %v238
      %v440 = vunpack.c.l.b16 %v239
      %v441 = vunpack.c.l.b16 %v240
      %v442 = vunpack.c.l.b16 %v241
      %v443 = vunpack.c.l.b16 %v242
      %v444 = vunpack.c.l.b16 %v243
      %v445 = vunpack.c.l.b16 %v244
      %v446 = vunpack.c.l.b16 %v245
      %v447 = vunpack.c.l.b16 %v246
      %v448 = vunpack.c.l.b16 %v247
      %v449 = vunpack.c.l.b16 %v248
      %v450 = vunpack.c.l.b16 %v249
      %v451 = vunpack.c.l.b16 %v250
      %v452 = vunpack.c.l.b16 %v251
      %v453 = vunpack.c.l.b16 %v252
      %v454 = vunpack.c.l.b16 %v253
      %v455 = vunpack.c.l.b16 %v254
      %v456 = vunpack.c.l.b16 %v255
      %v457 = vunpack.c.l.b16 %v256
      %v458 = vunpack.c.l.b16 %v257
      %v459 = vunpack.c.l.b16 %v258
      %v460 = vunpack.c.l.b16 %v259
      %v461 = vunpack.c.l.b16 %v260
      %v462 = vunpack.c.l.b16 %v261
      %v463 = vunpack.c.l.b16 %v262
      %v464 = vunpack.c.l.b16 %v263
      %v465 = vunpack.c.l.b16 %v264
      %v466 = vunpack.c.l.b16 %v265
      %v467 = vunpack.c.l.b16 %v266
      %v468 = vunpack.c.l.b16 %v267
      %v469 = vunpack.c.l.b16 %v268
      %v470 = vunpack.c.l.b16 %v269
      %v471 = vunpack.c.l.b16 %v270
      %v472 = vunpack.c.l.b16 %v271
      %v473 = vunpack.c.l.b16 %v272
      %v474 = vunpack.c.l.b16 %v273
      %v475 = vunpack.c.l.b16 %v274
      %v476 = vunpack.c.l.b16 %v275
      %v477 = vunpack.c.l.b16 %v276
      %v478 = vunpack.c.l.b16 %v277
      %v479 = vunpack.c.l.b16 %v278
      %v480 = vunpack.c.l.b16 %v279
      %v481 = vunpack.c.l.b16 %v280
      %v482 = vunpack.c.l.b16 %v281
      %v483 = vunpack.c.l.b16 %v282
      %v484 = vunpack.c.l.b16 %v283
      %v485 = vunpack.c.l.b16 %v284
      %v486 = vunpack.c.l.b16 %v285
      %v487 = vunpack.c.l.b16 %v286
      %v488 = vunpack.c.l.b16 %v287
      %v489 = vunpack.c.l.b16 %v288
      %v490 = vunpack.c.l.b16 %v289
      %v491 = vunpack.c.l.b16 %v290
      %v492 = vunpack.c.l.b16 %v291
      %v493 = vunpack.c.l.b16 %v292
      %v494 = vunpack.c.l.b16 %v293
      %v495 = vunpack.c.l.b16 %v294
      %v496 = vunpack.c.l.b16 %v295
      %v497 = vunpack.c.l.b16 %v296
      %v498 = vunpack.c.l.b16 %v297
      %v499 = vunpack.c.l.b16 %v298
      %v500 = vunpack.c.l.b16 %v299
      %v501 = vunpack.c.l.b16 %v300
      %v502 = vunpack.c.l.b16 %v301
      %v503 = vunpack.c.l.b16 %v302
      %v504 = vunpack.c.l.b16 %v303
      %v505 = vunpack.c.l.b16 %v304
      %v506 = vunpack.c.l.b16 %v305
      %v507 = vunpack.c.l.b16 %v306
      %v508 = vunpack.c.l.b16 %v307
      %v509 = vunpack.c.l.b16 %v308
      %v510 = vunpack.c.l.b16 %v309
      %v511 = vunpack.c.l.b16 %v310
      %v512 = vunpack.c.l.b16 %v311
      %v513 = vunpack.c.l.b16 %v312
      %v514 = vunpack.c.l.b16 %v313
      %v515 = vunpack.c.l.b16 %v314
      %v516 = vunpack.c.l.b16 %v315
      %v517 = vunpack.c.l.b16 %v316
      %v518 = vunpack.c.l.b16 %v317
      %v519 = vunpack.c.l.b16 %v318
      %v520 = vunpack.c.l.b16 %v319
      %v521 = vunpack.c.l.b16 %v320
      %v522 = vunpack.c.l.b16 %v321
      %v523 = vpack.c.b16 %v428, %v427
      %v524 = vpack.c.b16 %v430, %v429
      %v525 = vpack.c.b16 %v432, %v431
      %v526 = vpack.c.b16 %v434, %v433
      %v527 = vpack.c.b16 %v436, %v435
      %v528 = vpack.c.b16 %v438, %v437
      %v529 = vpack.c.b16 %v440, %v439
      %v530 = vpack.c.b16 %v442, %v441
      %v531 = vpack.c.b16 %v444, %v443
      %v532 = vpack.c.b16 %v446, %v445
      %v533 = vpack.c.b16 %v448, %v447
      %v534 = vpack.c.b16 %v450, %v449
      %v535 = vpack.c.b16 %v452, %v451
      %v536 = vpack.c.b16 %v454, %v453
      %v537 = vpack.c.b16 %v456, %v455
      %v538 = vpack.c.b16 %v458, %v457
      %v539 = vpack.c.b16 %v460, %v459
      %v540 = vpack.c.b16 %v462, %v461
      %v541 = vpack.c.b16 %v464, %v463
      %v542 = vpack.c.b16 %v466, %v465
      %v543 = vpack.c.b16 %v468, %v467
      %v544 = vpack.c.b16 %v470, %v469
      %v545 = vpack.c.b16 %v472, %v471
      %v546 = vpack.c.b16 %v474, %v473
      %v547 = vpack.c.b16 %v476, %v475
      %v548 = vpack.c.b16 %v478, %v477
      %v549 = vpack.c.b16 %v480, %v479
      %v550 = vpack.c.b16 %v482, %v481
      %v551 = vpack.c.b16 %v484, %v483
      %v552 = vpack.c.b16 %v486, %v485
      %v553 = vpack.c.b16 %v488, %v487
      %v554 = vpack.c.b16 %v490, %v489
      %v555 = vpack.c.b16 %v492, %v491
      %v556 = vpack.c.b16 %v494, %v493
      %v557 = vpack.c.b16 %v496, %v495
      %v558 = vpack.c.b16 %v498, %v497
      %v559 = vpack.c.b16 %v500, %v499
      %v560 = vpack.c.b16 %v502, %v501
      %v561 = vpack.c.b16 %v504, %v503
      %v562 = vpack.c.b16 %v506, %v505
      %v563 = vpack.c.b16 %v508, %v507
      %v564 = vpack.c.b16 %v510, %v509
      %v565 = vpack.c.b16 %v512, %v511
      %v566 = vpack.c.b16 %v514, %v513
      %v567 = vpack.c.b16 %v516, %v515
      %v568 = vpack.c.b16 %v518, %v517
      %v569 = vpack.c.b16 %v520, %v519
      %v570 = vpack.c.b16 %v522, %v521
      %v576 = vunpack.c.l.b16 %v322
      %v577 = vunpack.c.l.b16 %v323
      %v578 = vunpack.c.l.b16 %v324
      %v579 = vunpack.c.l.b16 %v325
      %v580 = vunpack.c.l.b16 %v326
      %v581 = vpack.c.b16 %v577, %v576
      %v582 = vpack.c.b16 %v579, %v578
      %v583 = vpack.c.b16 %v580, %v580
      %vm586 = vcmask 293888
      %v588 = vsel %vm586, %v523, 0
      %v591 = vsel %vm586, %v524, 0
      %v594 = vsel %vm586, %v525, 0
      %v597 = vsel %vm586, %v526, 0
      %v600 = vsel %vm586, %v527, 0
      %v603 = vsel %vm586, %v528, 0
      %v606 = vsel %vm586, %v529, 0
      %v609 = vsel %vm586, %v530, 0
      %v612 = vsel %vm586, %v531, 0
      %v615 = vsel %vm586, %v532, 0
      %v618 = vsel %vm586, %v533, 0
      %v621 = vsel %vm586, %v534, 0
      %v624 = vsel %vm586, %v535, 0
      %v627 = vsel %vm586, %v536, 0
      %v630 = vsel %vm586, %v537, 0
      %v633 = vsel %vm586, %v538, 0
      %v636 = vsel %vm586, %v539, 0
      %v639 = vsel %vm586, %v540, 0
      %v642 = vsel %vm586, %v541, 0
      %v645 = vsel %vm586, %v542, 0
      %v648 = vsel %vm586, %v543, 0
      %v651 = vsel %vm586, %v544, 0
      %v654 = vsel %vm586, %v545, 0
      %v657 = vsel %vm586, %v546, 0
      %v660 = vsel %vm586, %v547, 0
      %v663 = vsel %vm586, %v548, 0
      %v666 = vsel %vm586, %v549, 0
      %v669 = vsel %vm586, %v550, 0
      %v672 = vsel %vm586, %v551, 0
      %v675 = vsel %vm586, %v552, 0
      %v678 = vsel %vm586, %v553, 0
      %v681 = vsel %vm586, %v554, 0
      %v684 = vsel %vm586, %v555, 0
      %v687 = vsel %vm586, %v556, 0
      %v690 = vsel %vm586, %v557, 0
      %v693 = vsel %vm586, %v558, 0
      %v696 = vsel %vm586, %v559, 0
      %v699 = vsel %vm586, %v560, 0
      %v702 = vsel %vm586, %v561, 0
      %v705 = vsel %vm586, %v562, 0
      %v708 = vsel %vm586, %v563, 0
      %v711 = vsel %vm586, %v564, 0
      %v714 = vsel %vm586, %v565, 0
      %v717 = vsel %vm586, %v566, 0
      %v720 = vsel %vm586, %v567, 0
      %v723 = vsel %vm586, %v568, 0
      %v726 = vsel %vm586, %v569, 0
      %v729 = vsel %vm586, %v570, 0
      %vm731 = vcmask 1041408
      %v733 = vsel %vm731, %v583, 0
      %735 = vmatpush.bf16.msra.mxu0 0
      %736 = vmatpush.bf16.msra.mxu0 0
      %737 = vmatpush.bf16.msra.mxu0 0
      %738 = vmatpush.bf16.msra.mxu0 0
      %739 = vmatpush.bf16.msra.mxu0 0
      %740 = vmatpush.bf16.msra.mxu0 %v733
      %741 = vmatpush.bf16.msra.mxu0 %v582
      %742 = vmatpush.bf16.msra.mxu0 %v581
      %743 = vmatmul.bf16.gmra.mxu0 %v588
      %v744 = vpop.f32.mrf.mxu0
      %v745 = vadd.f32 %v329, %v744
      %v746 = vpop.f32.mrf.mxu0
      %v747 = vadd.f32 %v329, %v746
      %748 = vmatmul.bf16.gmra.mxu0 %v591
      %v749 = vpop.f32.mrf.mxu0
      %v750 = vadd.f32 %v329, %v749
      %v751 = vpop.f32.mrf.mxu0
      %v752 = vadd.f32 %v329, %v751
      %753 = vmatmul.bf16.gmra.mxu0 %v594
      %v754 = vpop.f32.mrf.mxu0
      %v755 = vadd.f32 %v329, %v754
      %v756 = vpop.f32.mrf.mxu0
      %v757 = vadd.f32 %v329, %v756
      %758 = vmatmul.bf16.gmra.mxu0 %v597
      %v759 = vpop.f32.mrf.mxu0
      %v760 = vadd.f32 %v329, %v759
      %v761 = vpop.f32.mrf.mxu0
      %v762 = vadd.f32 %v329, %v761
      %763 = vmatmul.bf16.gmra.mxu0 %v600
      %v764 = vpop.f32.mrf.mxu0
      %v765 = vadd.f32 %v329, %v764
      %v766 = vpop.f32.mrf.mxu0
      %v767 = vadd.f32 %v329, %v766
      %768 = vmatmul.bf16.gmra.mxu0 %v603
      %v769 = vpop.f32.mrf.mxu0
      %v770 = vadd.f32 %v329, %v769
      %v771 = vpop.f32.mrf.mxu0
      %v772 = vadd.f32 %v329, %v771
      %773 = vmatmul.bf16.gmra.mxu0 %v606
      %v774 = vpop.f32.mrf.mxu0
      %v775 = vadd.f32 %v329, %v774
      %v776 = vpop.f32.mrf.mxu0
      %v777 = vadd.f32 %v329, %v776
      %778 = vmatmul.bf16.gmra.mxu0 %v609
      %v779 = vpop.f32.mrf.mxu0
      %v780 = vadd.f32 %v329, %v779
      %v781 = vpop.f32.mrf.mxu0
      %v782 = vadd.f32 %v329, %v781
      %783 = vmatmul.bf16.gmra.mxu0 %v612
      %v784 = vpop.f32.mrf.mxu0
      %v785 = vadd.f32 %v329, %v784
      %v786 = vpop.f32.mrf.mxu0
      %v787 = vadd.f32 %v329, %v786
      %788 = vmatmul.bf16.gmra.mxu0 %v615
      %v789 = vpop.f32.mrf.mxu0
      %v790 = vadd.f32 %v329, %v789
      %v791 = vpop.f32.mrf.mxu0
      %v792 = vadd.f32 %v329, %v791
      %793 = vmatmul.bf16.gmra.mxu0 %v618
      %v794 = vpop.f32.mrf.mxu0
      %v795 = vadd.f32 %v329, %v794
      %v796 = vpop.f32.mrf.mxu0
      %v797 = vadd.f32 %v329, %v796
      %798 = vmatmul.bf16.gmra.mxu0 %v621
      %v799 = vpop.f32.mrf.mxu0
      %v800 = vadd.f32 %v329, %v799
      %v801 = vpop.f32.mrf.mxu0
      %v802 = vadd.f32 %v329, %v801
      %803 = vmatmul.bf16.gmra.mxu0 %v624
      %v804 = vpop.f32.mrf.mxu0
      %v805 = vadd.f32 %v329, %v804
      %v806 = vpop.f32.mrf.mxu0
      %v807 = vadd.f32 %v329, %v806
      %808 = vmatmul.bf16.gmra.mxu0 %v627
      %v809 = vpop.f32.mrf.mxu0
      %v810 = vadd.f32 %v329, %v809
      %v811 = vpop.f32.mrf.mxu0
      %v812 = vadd.f32 %v329, %v811
      %813 = vmatmul.bf16.gmra.mxu0 %v630
      %v814 = vpop.f32.mrf.mxu0
      %v815 = vadd.f32 %v329, %v814
      %v816 = vpop.f32.mrf.mxu0
      %v817 = vadd.f32 %v329, %v816
      %818 = vmatmul.bf16.gmra.mxu0 %v633
      %v819 = vpop.f32.mrf.mxu0
      %v820 = vadd.f32 %v329, %v819
      %v821 = vpop.f32.mrf.mxu0
      %v822 = vadd.f32 %v329, %v821
      %823 = vmatmul.bf16.gmra.mxu0 %v636
      %v824 = vpop.f32.mrf.mxu0
      %v825 = vadd.f32 %v329, %v824
      %v826 = vpop.f32.mrf.mxu0
      %v827 = vadd.f32 %v329, %v826
      %828 = vmatmul.bf16.gmra.mxu0 %v639
      %v829 = vpop.f32.mrf.mxu0
      %v830 = vadd.f32 %v329, %v829
      %v831 = vpop.f32.mrf.mxu0
      %v832 = vadd.f32 %v329, %v831
      %833 = vmatmul.bf16.gmra.mxu0 %v642
      %v834 = vpop.f32.mrf.mxu0
      %v835 = vadd.f32 %v329, %v834
      %v836 = vpop.f32.mrf.mxu0
      %v837 = vadd.f32 %v329, %v836
      %838 = vmatmul.bf16.gmra.mxu0 %v645
      %v839 = vpop.f32.mrf.mxu0
      %v840 = vadd.f32 %v329, %v839
      %v841 = vpop.f32.mrf.mxu0
      %v842 = vadd.f32 %v329, %v841
      %843 = vmatmul.bf16.gmra.mxu0 %v648
      %v844 = vpop.f32.mrf.mxu0
      %v845 = vadd.f32 %v329, %v844
      %v846 = vpop.f32.mrf.mxu0
      %v847 = vadd.f32 %v329, %v846
      %848 = vmatmul.bf16.gmra.mxu0 %v651
      %v849 = vpop.f32.mrf.mxu0
      %v850 = vadd.f32 %v329, %v849
      %v851 = vpop.f32.mrf.mxu0
      %v852 = vadd.f32 %v329, %v851
      %853 = vmatmul.bf16.gmra.mxu0 %v654
      %v854 = vpop.f32.mrf.mxu0
      %v855 = vadd.f32 %v329, %v854
      %v856 = vpop.f32.mrf.mxu0
      %v857 = vadd.f32 %v329, %v856
      %858 = vmatmul.bf16.gmra.mxu0 %v657
      %v859 = vpop.f32.mrf.mxu0
      %v860 = vadd.f32 %v329, %v859
      %v861 = vpop.f32.mrf.mxu0
      %v862 = vadd.f32 %v329, %v861
      %863 = vmatmul.bf16.gmra.mxu0 %v660
      %v864 = vpop.f32.mrf.mxu0
      %v865 = vadd.f32 %v329, %v864
      %v866 = vpop.f32.mrf.mxu0
      %v867 = vadd.f32 %v329, %v866
      %868 = vmatmul.bf16.gmra.mxu0 %v663
      %v869 = vpop.f32.mrf.mxu0
      %v870 = vadd.f32 %v329, %v869
      %v871 = vpop.f32.mrf.mxu0
      %v872 = vadd.f32 %v329, %v871
      %873 = vmatmul.bf16.gmra.mxu0 %v666
      %v874 = vpop.f32.mrf.mxu0
      %v875 = vadd.f32 %v329, %v874
      %v876 = vpop.f32.mrf.mxu0
      %v877 = vadd.f32 %v329, %v876
      %878 = vmatmul.bf16.gmra.mxu0 %v669
      %v879 = vpop.f32.mrf.mxu0
      %v880 = vadd.f32 %v329, %v879
      %v881 = vpop.f32.mrf.mxu0
      %v882 = vadd.f32 %v329, %v881
      %883 = vmatmul.bf16.gmra.mxu0 %v672
      %v884 = vpop.f32.mrf.mxu0
      %v885 = vadd.f32 %v329, %v884
      %v886 = vpop.f32.mrf.mxu0
      %v887 = vadd.f32 %v329, %v886
      %888 = vmatmul.bf16.gmra.mxu0 %v675
      %v889 = vpop.f32.mrf.mxu0
      %v890 = vadd.f32 %v329, %v889
      %v891 = vpop.f32.mrf.mxu0
      %v892 = vadd.f32 %v329, %v891
      %893 = vmatmul.bf16.gmra.mxu0 %v678
      %v894 = vpop.f32.mrf.mxu0
      %v895 = vadd.f32 %v329, %v894
      %v896 = vpop.f32.mrf.mxu0
      %v897 = vadd.f32 %v329, %v896
      %898 = vmatmul.bf16.gmra.mxu0 %v681
      %v899 = vpop.f32.mrf.mxu0
      %v900 = vadd.f32 %v329, %v899
      %v901 = vpop.f32.mrf.mxu0
      %v902 = vadd.f32 %v329, %v901
      %903 = vmatmul.bf16.gmra.mxu0 %v684
      %v904 = vpop.f32.mrf.mxu0
      %v905 = vadd.f32 %v329, %v904
      %v906 = vpop.f32.mrf.mxu0
      %v907 = vadd.f32 %v329, %v906
      %908 = vmatmul.bf16.gmra.mxu0 %v687
      %v909 = vpop.f32.mrf.mxu0
      %v910 = vadd.f32 %v329, %v909
      %v911 = vpop.f32.mrf.mxu0
      %v912 = vadd.f32 %v329, %v911
      %913 = vmatmul.bf16.gmra.mxu0 %v690
      %v914 = vpop.f32.mrf.mxu0
      %v915 = vadd.f32 %v329, %v914
      %v916 = vpop.f32.mrf.mxu0
      %v917 = vadd.f32 %v329, %v916
      %918 = vmatmul.bf16.gmra.mxu0 %v693
      %v919 = vpop.f32.mrf.mxu0
      %v920 = vadd.f32 %v329, %v919
      %v921 = vpop.f32.mrf.mxu0
      %v922 = vadd.f32 %v329, %v921
      %923 = vmatmul.bf16.gmra.mxu0 %v696
      %v924 = vpop.f32.mrf.mxu0
      %v925 = vadd.f32 %v329, %v924
      %v926 = vpop.f32.mrf.mxu0
      %v927 = vadd.f32 %v329, %v926
      %928 = vmatmul.bf16.gmra.mxu0 %v699
      %v929 = vpop.f32.mrf.mxu0
      %v930 = vadd.f32 %v329, %v929
      %v931 = vpop.f32.mrf.mxu0
      %v932 = vadd.f32 %v329, %v931
      %933 = vmatmul.bf16.gmra.mxu0 %v702
      %v934 = vpop.f32.mrf.mxu0
      %v935 = vadd.f32 %v329, %v934
      %v936 = vpop.f32.mrf.mxu0
      %v937 = vadd.f32 %v329, %v936
      %938 = vmatmul.bf16.gmra.mxu0 %v705
      %v939 = vpop.f32.mrf.mxu0
      %v940 = vadd.f32 %v329, %v939
      %v941 = vpop.f32.mrf.mxu0
      %v942 = vadd.f32 %v329, %v941
      %943 = vmatmul.bf16.gmra.mxu0 %v708
      %v944 = vpop.f32.mrf.mxu0
      %v945 = vadd.f32 %v329, %v944
      %v946 = vpop.f32.mrf.mxu0
      %v947 = vadd.f32 %v329, %v946
      %948 = vmatmul.bf16.gmra.mxu0 %v711
      %v949 = vpop.f32.mrf.mxu0
      %v950 = vadd.f32 %v329, %v949
      %v951 = vpop.f32.mrf.mxu0
      %v952 = vadd.f32 %v329, %v951
      %953 = vmatmul.bf16.gmra.mxu0 %v714
      %v954 = vpop.f32.mrf.mxu0
      %v955 = vadd.f32 %v329, %v954
      %v956 = vpop.f32.mrf.mxu0
      %v957 = vadd.f32 %v329, %v956
      %958 = vmatmul.bf16.gmra.mxu0 %v717
      %v959 = vpop.f32.mrf.mxu0
      %v960 = vadd.f32 %v329, %v959
      %v961 = vpop.f32.mrf.mxu0
      %v962 = vadd.f32 %v329, %v961
      %963 = vmatmul.bf16.gmra.mxu0 %v720
      %v964 = vpop.f32.mrf.mxu0
      %v965 = vadd.f32 %v329, %v964
      %v966 = vpop.f32.mrf.mxu0
      %v967 = vadd.f32 %v329, %v966
      %968 = vmatmul.bf16.gmra.mxu0 %v723
      %v969 = vpop.f32.mrf.mxu0
      %v970 = vadd.f32 %v329, %v969
      %v971 = vpop.f32.mrf.mxu0
      %v972 = vadd.f32 %v329, %v971
      %973 = vmatmul.bf16.gmra.mxu0 %v726
      %v974 = vpop.f32.mrf.mxu0
      %v975 = vadd.f32 %v329, %v974
      %v976 = vpop.f32.mrf.mxu0
      %v977 = vadd.f32 %v329, %v976
      %978 = vmatmul.bf16.gmra.mxu0 %v729
      %v979 = vpop.f32.mrf.mxu0
      %v980 = vadd.f32 %v329, %v979
      %v981 = vpop.f32.mrf.mxu0
      %v982 = vadd.f32 %v329, %v981
      %983 = vdwg.mxu0
      %v984 = vmax.f32 %v745, 0.0
      %v985 = vmax.f32 %v747, 0.0
      %v986 = vmax.f32 %v750, 0.0
      %v987 = vmax.f32 %v752, 0.0
      %v988 = vmax.f32 %v755, 0.0
      %v989 = vmax.f32 %v757, 0.0
      %v990 = vmax.f32 %v760, 0.0
      %v991 = vmax.f32 %v762, 0.0
      %v992 = vmax.f32 %v765, 0.0
      %v993 = vmax.f32 %v767, 0.0
      %v994 = vmax.f32 %v770, 0.0
      %v995 = vmax.f32 %v772, 0.0
      %v996 = vmax.f32 %v775, 0.0
      %v997 = vmax.f32 %v777, 0.0
      %v998 = vmax.f32 %v780, 0.0
      %v999 = vmax.f32 %v782, 0.0
      %v1000 = vmax.f32 %v785, 0.0
      %v1001 = vmax.f32 %v787, 0.0
      %v1002 = vmax.f32 %v790, 0.0
      %v1003 = vmax.f32 %v792, 0.0
      %v1004 = vmax.f32 %v795, 0.0
      %v1005 = vmax.f32 %v797, 0.0
      %v1006 = vmax.f32 %v800, 0.0
      %v1007 = vmax.f32 %v802, 0.0
      %v1008 = vmax.f32 %v805, 0.0
      %v1009 = vmax.f32 %v807, 0.0
      %v1010 = vmax.f32 %v810, 0.0
      %v1011 = vmax.f32 %v812, 0.0
      %v1012 = vmax.f32 %v815, 0.0
      %v1013 = vmax.f32 %v817, 0.0
      %v1014 = vmax.f32 %v820, 0.0
      %v1015 = vmax.f32 %v822, 0.0
      %v1016 = vmax.f32 %v825, 0.0
      %v1017 = vmax.f32 %v827, 0.0
      %v1018 = vmax.f32 %v830, 0.0
      %v1019 = vmax.f32 %v832, 0.0
      %v1020 = vmax.f32 %v835, 0.0
      %v1021 = vmax.f32 %v837, 0.0
      %v1022 = vmax.f32 %v840, 0.0
      %v1023 = vmax.f32 %v842, 0.0
      %v1024 = vmax.f32 %v845, 0.0
      %v1025 = vmax.f32 %v847, 0.0
      %v1026 = vmax.f32 %v850, 0.0
      %v1027 = vmax.f32 %v852, 0.0
      %v1028 = vmax.f32 %v855, 0.0
      %v1029 = vmax.f32 %v857, 0.0
      %v1030 = vmax.f32 %v860, 0.0
      %v1031 = vmax.f32 %v862, 0.0
      %v1032 = vmax.f32 %v865, 0.0
      %v1033 = vmax.f32 %v867, 0.0
      %v1034 = vmax.f32 %v870, 0.0
      %v1035 = vmax.f32 %v872, 0.0
      %v1036 = vmax.f32 %v875, 0.0
      %v1037 = vmax.f32 %v877, 0.0
      %v1038 = vmax.f32 %v880, 0.0
      %v1039 = vmax.f32 %v882, 0.0
      %v1040 = vmax.f32 %v885, 0.0
      %v1041 = vmax.f32 %v887, 0.0
      %v1042 = vmax.f32 %v890, 0.0
      %v1043 = vmax.f32 %v892, 0.0
      %v1044 = vmax.f32 %v895, 0.0
      %v1045 = vmax.f32 %v897, 0.0
      %v1046 = vmax.f32 %v900, 0.0
      %v1047 = vmax.f32 %v902, 0.0
      %v1048 = vmax.f32 %v905, 0.0
      %v1049 = vmax.f32 %v907, 0.0
      %v1050 = vmax.f32 %v910, 0.0
      %v1051 = vmax.f32 %v912, 0.0
      %v1052 = vmax.f32 %v915, 0.0
      %v1053 = vmax.f32 %v917, 0.0
      %v1054 = vmax.f32 %v920, 0.0
      %v1055 = vmax.f32 %v922, 0.0
      %v1056 = vmax.f32 %v925, 0.0
      %v1057 = vmax.f32 %v927, 0.0
      %v1058 = vmax.f32 %v930, 0.0
      %v1059 = vmax.f32 %v932, 0.0
      %v1060 = vmax.f32 %v935, 0.0
      %v1061 = vmax.f32 %v937, 0.0
      %v1062 = vmax.f32 %v940, 0.0
      %v1063 = vmax.f32 %v942, 0.0
      %v1064 = vmax.f32 %v945, 0.0
      %v1065 = vmax.f32 %v947, 0.0
      %v1066 = vmax.f32 %v950, 0.0
      %v1067 = vmax.f32 %v952, 0.0
      %v1068 = vmax.f32 %v955, 0.0
      %v1069 = vmax.f32 %v957, 0.0
      %v1070 = vmax.f32 %v960, 0.0
      %v1071 = vmax.f32 %v962, 0.0
      %v1072 = vmax.f32 %v965, 0.0
      %v1073 = vmax.f32 %v967, 0.0
      %v1074 = vmax.f32 %v970, 0.0
      %v1075 = vmax.f32 %v972, 0.0
      %v1076 = vmax.f32 %v975, 0.0
      %v1077 = vmax.f32 %v977, 0.0
      %v1078 = vmax.f32 %v980, 0.0
      %v1079 = vmax.f32 %v982, 0.0
      %vm1080 = vcmask 64512
      %v1081 = vsel %vm1080, %v984, 0.0
      %v1082 = vsel %vm1080, %v985, 0.0
      %v1083 = vadd.f32 %v1081, %v1082
      %v1084 = vsel %vm1080, %v986, 0.0
      %v1085 = vadd.f32 %v1083, %v1084
      %v1086 = vsel %vm1080, %v987, 0.0
      %v1087 = vadd.f32 %v1085, %v1086
      %v1088 = vsel %vm1080, %v988, 0.0
      %v1089 = vadd.f32 %v1087, %v1088
      %v1090 = vsel %vm1080, %v989, 0.0
      %v1091 = vadd.f32 %v1089, %v1090
      %v1092 = vsel %vm1080, %v990, 0.0
      %v1093 = vadd.f32 %v1091, %v1092
      %v1094 = vsel %vm1080, %v991, 0.0
      %v1095 = vadd.f32 %v1093, %v1094
      %v1096 = vsel %vm1080, %v992, 0.0
      %v1097 = vadd.f32 %v1095, %v1096
      %v1098 = vsel %vm1080, %v993, 0.0
      %v1099 = vadd.f32 %v1097, %v1098
      %v1100 = vsel %vm1080, %v994, 0.0
      %v1101 = vadd.f32 %v1099, %v1100
      %v1102 = vsel %vm1080, %v995, 0.0
      %v1103 = vadd.f32 %v1101, %v1102
      %v1104 = vsel %vm1080, %v996, 0.0
      %v1105 = vadd.f32 %v1103, %v1104
      %v1106 = vsel %vm1080, %v997, 0.0
      %v1107 = vadd.f32 %v1105, %v1106
      %v1108 = vsel %vm1080, %v998, 0.0
      %v1109 = vadd.f32 %v1107, %v1108
      %v1110 = vsel %vm1080, %v999, 0.0
      %v1111 = vadd.f32 %v1109, %v1110
      %v1112 = vsel %vm1080, %v1000, 0.0
      %v1113 = vadd.f32 %v1111, %v1112
      %v1114 = vsel %vm1080, %v1001, 0.0
      %v1115 = vadd.f32 %v1113, %v1114
      %v1116 = vsel %vm1080, %v1002, 0.0
      %v1117 = vadd.f32 %v1115, %v1116
      %v1118 = vsel %vm1080, %v1003, 0.0
      %v1119 = vadd.f32 %v1117, %v1118
      %v1120 = vsel %vm1080, %v1004, 0.0
      %v1121 = vadd.f32 %v1119, %v1120
      %v1122 = vsel %vm1080, %v1005, 0.0
      %v1123 = vadd.f32 %v1121, %v1122
      %v1124 = vsel %vm1080, %v1006, 0.0
      %v1125 = vadd.f32 %v1123, %v1124
      %v1126 = vsel %vm1080, %v1007, 0.0
      %v1127 = vadd.f32 %v1125, %v1126
      %v1128 = vsel %vm1080, %v1008, 0.0
      %v1129 = vadd.f32 %v1127, %v1128
      %v1130 = vsel %vm1080, %v1009, 0.0
      %v1131 = vadd.f32 %v1129, %v1130
      %v1132 = vsel %vm1080, %v1010, 0.0
      %v1133 = vadd.f32 %v1131, %v1132
      %v1134 = vsel %vm1080, %v1011, 0.0
      %v1135 = vadd.f32 %v1133, %v1134
      %v1136 = vsel %vm1080, %v1012, 0.0
      %v1137 = vadd.f32 %v1135, %v1136
      %v1138 = vsel %vm1080, %v1013, 0.0
      %v1139 = vadd.f32 %v1137, %v1138
      %v1140 = vsel %vm1080, %v1014, 0.0
      %v1141 = vadd.f32 %v1139, %v1140
      %v1142 = vsel %vm1080, %v1015, 0.0
      %v1143 = vadd.f32 %v1141, %v1142
      %v1144 = vrot.slane %v1143, 4
      %v1145 = vadd.f32 %v1143, %v1144
      %v1146 = vrot.slane %v1145, 2
      %v1147 = vadd.f32 %v1145, %v1146
      %v1148 = vrot.slane %v1147, 1
      %v1149 = vadd.f32 %v1147, %v1148
      %v1150 = vsel %vm1080, %v1016, 0.0
      %v1151 = vsel %vm1080, %v1017, 0.0
      %v1152 = vadd.f32 %v1150, %v1151
      %v1153 = vsel %vm1080, %v1018, 0.0
      %v1154 = vadd.f32 %v1152, %v1153
      %v1155 = vsel %vm1080, %v1019, 0.0
      %v1156 = vadd.f32 %v1154, %v1155
      %v1157 = vsel %vm1080, %v1020, 0.0
      %v1158 = vadd.f32 %v1156, %v1157
      %v1159 = vsel %vm1080, %v1021, 0.0
      %v1160 = vadd.f32 %v1158, %v1159
      %v1161 = vsel %vm1080, %v1022, 0.0
      %v1162 = vadd.f32 %v1160, %v1161
      %v1163 = vsel %vm1080, %v1023, 0.0
      %v1164 = vadd.f32 %v1162, %v1163
      %v1165 = vsel %vm1080, %v1024, 0.0
      %v1166 = vadd.f32 %v1164, %v1165
      %v1167 = vsel %vm1080, %v1025, 0.0
      %v1168 = vadd.f32 %v1166, %v1167
      %v1169 = vsel %vm1080, %v1026, 0.0
      %v1170 = vadd.f32 %v1168, %v1169
      %v1171 = vsel %vm1080, %v1027, 0.0
      %v1172 = vadd.f32 %v1170, %v1171
      %v1173 = vsel %vm1080, %v1028, 0.0
      %v1174 = vadd.f32 %v1172, %v1173
      %v1175 = vsel %vm1080, %v1029, 0.0
      %v1176 = vadd.f32 %v1174, %v1175
      %v1177 = vsel %vm1080, %v1030, 0.0
      %v1178 = vadd.f32 %v1176, %v1177
      %v1179 = vsel %vm1080, %v1031, 0.0
      %v1180 = vadd.f32 %v1178, %v1179
      %v1181 = vsel %vm1080, %v1032, 0.0
      %v1182 = vadd.f32 %v1180, %v1181
      %v1183 = vsel %vm1080, %v1033, 0.0
      %v1184 = vadd.f32 %v1182, %v1183
      %v1185 = vsel %vm1080, %v1034, 0.0
      %v1186 = vadd.f32 %v1184, %v1185
      %v1187 = vsel %vm1080, %v1035, 0.0
      %v1188 = vadd.f32 %v1186, %v1187
      %v1189 = vsel %vm1080, %v1036, 0.0
      %v1190 = vadd.f32 %v1188, %v1189
      %v1191 = vsel %vm1080, %v1037, 0.0
      %v1192 = vadd.f32 %v1190, %v1191
      %v1193 = vsel %vm1080, %v1038, 0.0
      %v1194 = vadd.f32 %v1192, %v1193
      %v1195 = vsel %vm1080, %v1039, 0.0
      %v1196 = vadd.f32 %v1194, %v1195
      %v1197 = vsel %vm1080, %v1040, 0.0
      %v1198 = vadd.f32 %v1196, %v1197
      %v1199 = vsel %vm1080, %v1041, 0.0
      %v1200 = vadd.f32 %v1198, %v1199
      %v1201 = vsel %vm1080, %v1042, 0.0
      %v1202 = vadd.f32 %v1200, %v1201
      %v1203 = vsel %vm1080, %v1043, 0.0
      %v1204 = vadd.f32 %v1202, %v1203
      %v1205 = vsel %vm1080, %v1044, 0.0
      %v1206 = vadd.f32 %v1204, %v1205
      %v1207 = vsel %vm1080, %v1045, 0.0
      %v1208 = vadd.f32 %v1206, %v1207
      %v1209 = vsel %vm1080, %v1046, 0.0
      %v1210 = vadd.f32 %v1208, %v1209
      %v1211 = vsel %vm1080, %v1047, 0.0
      %v1212 = vadd.f32 %v1210, %v1211
      %v1213 = vrot.slane %v1212, 4
      %v1214 = vadd.f32 %v1212, %v1213
      %v1215 = vrot.slane %v1214, 2
      %v1216 = vadd.f32 %v1214, %v1215
      %v1217 = vrot.slane %v1216, 1
      %v1218 = vadd.f32 %v1216, %v1217
      %v1219 = vsel %vm1080, %v1048, 0.0
      %v1220 = vsel %vm1080, %v1049, 0.0
      %v1221 = vadd.f32 %v1219, %v1220
      %v1222 = vsel %vm1080, %v1050, 0.0
      %v1223 = vadd.f32 %v1221, %v1222
      %v1224 = vsel %vm1080, %v1051, 0.0
      %v1225 = vadd.f32 %v1223, %v1224
      %v1226 = vsel %vm1080, %v1052, 0.0
      %v1227 = vadd.f32 %v1225, %v1226
      %v1228 = vsel %vm1080, %v1053, 0.0
      %v1229 = vadd.f32 %v1227, %v1228
      %v1230 = vsel %vm1080, %v1054, 0.0
      %v1231 = vadd.f32 %v1229, %v1230
      %v1232 = vsel %vm1080, %v1055, 0.0
      %v1233 = vadd.f32 %v1231, %v1232
      %v1234 = vsel %vm1080, %v1056, 0.0
      %v1235 = vadd.f32 %v1233, %v1234
      %v1236 = vsel %vm1080, %v1057, 0.0
      %v1237 = vadd.f32 %v1235, %v1236
      %v1238 = vsel %vm1080, %v1058, 0.0
      %v1239 = vadd.f32 %v1237, %v1238
      %v1240 = vsel %vm1080, %v1059, 0.0
      %v1241 = vadd.f32 %v1239, %v1240
      %v1242 = vsel %vm1080, %v1060, 0.0
      %v1243 = vadd.f32 %v1241, %v1242
      %v1244 = vsel %vm1080, %v1061, 0.0
      %v1245 = vadd.f32 %v1243, %v1244
      %v1246 = vsel %vm1080, %v1062, 0.0
      %v1247 = vadd.f32 %v1245, %v1246
      %v1248 = vsel %vm1080, %v1063, 0.0
      %v1249 = vadd.f32 %v1247, %v1248
      %v1250 = vsel %vm1080, %v1064, 0.0
      %v1251 = vadd.f32 %v1249, %v1250
      %v1252 = vsel %vm1080, %v1065, 0.0
      %v1253 = vadd.f32 %v1251, %v1252
      %v1254 = vsel %vm1080, %v1066, 0.0
      %v1255 = vadd.f32 %v1253, %v1254
      %v1256 = vsel %vm1080, %v1067, 0.0
      %v1257 = vadd.f32 %v1255, %v1256
      %v1258 = vsel %vm1080, %v1068, 0.0
      %v1259 = vadd.f32 %v1257, %v1258
      %v1260 = vsel %vm1080, %v1069, 0.0
      %v1261 = vadd.f32 %v1259, %v1260
      %v1262 = vsel %vm1080, %v1070, 0.0
      %v1263 = vadd.f32 %v1261, %v1262
      %v1264 = vsel %vm1080, %v1071, 0.0
      %v1265 = vadd.f32 %v1263, %v1264
      %v1266 = vsel %vm1080, %v1072, 0.0
      %v1267 = vadd.f32 %v1265, %v1266
      %v1268 = vsel %vm1080, %v1073, 0.0
      %v1269 = vadd.f32 %v1267, %v1268
      %v1270 = vsel %vm1080, %v1074, 0.0
      %v1271 = vadd.f32 %v1269, %v1270
      %v1272 = vsel %vm1080, %v1075, 0.0
      %v1273 = vadd.f32 %v1271, %v1272
      %v1274 = vsel %vm1080, %v1076, 0.0
      %v1275 = vadd.f32 %v1273, %v1274
      %v1276 = vsel %vm1080, %v1077, 0.0
      %v1277 = vadd.f32 %v1275, %v1276
      %v1278 = vsel %vm1080, %v1078, 0.0
      %v1279 = vadd.f32 %v1277, %v1278
      %v1280 = vsel %vm1080, %v1079, 0.0
      %v1281 = vadd.f32 %v1279, %v1280
      %v1282 = vrot.slane %v1281, 4
      %v1283 = vadd.f32 %v1281, %v1282
      %v1284 = vrot.slane %v1283, 2
      %v1285 = vadd.f32 %v1283, %v1284
      %v1286 = vrot.slane %v1285, 1
      %v1287 = vadd.f32 %v1285, %v1286
      %v1288 = vmul.f32 %v1149, 0.00390625
      %v1289 = vmul.f32 %v1218, 0.00390625
      %v1290 = vmul.f32 %v1287, 0.00390625
      %v1291 = vld [vmem:[%s3] sm:$0xff]
      %v1292 = vld [vmem:[%s4] sm:$0x1]
      %v1294 = vperm.slane %v1292, 0
      %vm1299 = vcmask 1041409
      %v1300 = vsel %vm1299, %v1289, %v1288
      %vm1301 = vcmask 1042434
      %v1302 = vsel %vm1301, %v1290, %v1300
      %v1303 = vsel %vm1080, %v1302, 0
      %1305 = vmatpush.msra.mxu0 0.0
      %1306 = vmatpush.msra.mxu0 0.0
      %1307 = vmatpush.msra.mxu0 0.0
      %1308 = vmatpush.msra.mxu0 0.0
      %1309 = vmatpush.msra.mxu0 0.0
      %1310 = vmatpush.msra.mxu0 0.0
      %1311 = vmatpush.msra.mxu0 0.0
      %1312 = vmatpush.msra.mxu0 0.0
      %1313 = vmatpush.msra.mxu0 0.0
      %1314 = vmatpush.msra.mxu0 0.0
      %1315 = vmatpush.msra.mxu0 0.0
      %1316 = vmatpush.msra.mxu0 0.0
      %1317 = vmatpush.msra.mxu0 0.0
      %1318 = vmatpush.msra.mxu0 0.0
      %1319 = vmatpush.msra.mxu0 0.0
      %1320 = vmatpush.msra.mxu0 %v1291
      %1321 = vmatmul.f32.gmra.mxu0 %v1303
      %v1322 = vpop.f32.mrf.mxu0
      %v1323 = vadd.f32 %v1294, %v1322
      %1324 = vdwg.mxu0
      %v1325 = vmul.f32 %v1323, %v1323
      %vm1326 = vcmask 256000
      %v1327 = vsel %vm1326, %v1325, 0.0
      %1328 = vadd.xlane.f32.xlu0 %v1327
      %v1329 = vpop.xlane.xlu0 %1328
      %v1330 = vadd.f32 %v1329, 1e-12
      %v1331 = vrsqrt.pop %v1330
      %v1332 = vmul.f32 %v1331, %v1330
      %v1333 = vmul.f32 %v1332, %v1331
      %v1334 = vmul.f32 0.5, %v1333
      %v1335 = vsub.f32 1.5, %v1334
      %v1336 = vmul.f32 %v1331, %v1335
      %vm1337 = vweird.f32 %v1330
      %vm1338 = vweird.f32 %v1331
      %vm1339 = vmor %vm1337, %vm1338
      %v1340 = vsel %vm1339, %v1331, %v1336
      %v1341 = vmul.f32 %v1323, %v1340
      %1342 = vst.msk [vmem:[%s224] sm:$0x7] %vm1326, %v1341
      %p1343 = scmp.lt.s32.totalorder %s16, 1
      %s1344 = scalar_select %p1343, %s16, 1
      %s1345 = smul.addr %s1344, 4
      %s1346 = scalar_lea.vmem %s5, %s1345
      // Predicated region
      $region41: #{encode.1} parent=39 // pred_check
        %p1347 = pneg %p144
      $region42: #{encode.1} parent=39 // pred_check_branch
        %1349 = sbr.rel (%p1347) target = $region44
      $region43: #{encode.1} parent=39 // pred_region
        _
      $region44: #{encode.1} parent=39 // pred_fallthru
        _
    $region40: #{encode.1} parent=5 // pred_fallthru
      _
    %p1350 = scmp.le.s32.totalorder 2, %s11
    // Predicated region
    $region45: #{encode.1} parent=5 // pred_check
      %p1351 = pneg %p1350
    $region46: #{encode.1} parent=5 // pred_check_branch
      %1353 = sbr.rel (%p1351) target = $region48
    $region47: #{encode.1} parent=5 // pred_region
      %s1354 = ssub.s32 %s11, 2
      // Predicated region
      $region49: #{encode.1} parent=47 // pred_check
        %p1355 = pneg %p150
      $region50: #{encode.1} parent=47 // pred_check_branch
        %1357 = sbr.rel (%p1355) target = $region52
      $region51: #{encode.1} parent=47 // pred_region
        %p1358 = scmp.lt.s32.totalorder %s17, 1
        %s1359 = scalar_select %p1358, %s17, 1
        %s1360 = smul.addr %s1359, 4
        %s1361 = scalar_lea.vmem %s5, %s1360
      $region52: #{encode.1} parent=47 // pred_fallthru
        _
    $region48: #{encode.1} parent=5 // pred_fallthru
      _
  $region6: #{encode.1} parent=0 // loop_footer
    %s15 = sadd.s32 1, %s11
  $region7: #{encode.1} parent=0 // loop_footer_branch
    %10 = sbr.rel target = $region3
  $region8: #{encode.1} parent=0 // loop_exit
    _

</llo_original>
